<compile_context>
chip_gen: v7x
topology: tpu7x:2x2x1
jax: 0.10.0
libtpu: 0.0.40
codegen_flags: <defaults>
</compile_context>

<pallas_src>
import functools
import math

import jax
import jax.numpy as jnp
from jax.experimental import pallas as pl
from jax.experimental.pallas import tpu as pltpu


def _prefactor(l: int, m: int) -> float:
    f = math.sqrt(
        (2 * l + 1)
        / (4.0 * math.pi)
        * math.factorial(l - m)
        / math.factorial(l + m)
    )
    return f * math.sqrt(2.0) if m > 0 else f


def _solid_harmonics_kernel(xyz_ref, out_ref, *, l_max: int):
    """xyz_ref: (3, G, 128) block; out_ref: (S, G, 128) block, S=(l_max+1)^2.

    The G sublane-rows are processed in chunks of 8 (one f32 vreg per
    per-point intermediate) so vreg pressure is O(1) irrespective of G.
    """
    g = xyz_ref.shape[1]
    odt = out_ref.dtype

    for c0 in range(0, g, 8):
        rows = pl.ds(c0, 8)                              # static sublane chunk
        x = xyz_ref[0, rows, :].astype(jnp.float32)      # (8, 128): 1 vreg
        y = xyz_ref[1, rows, :].astype(jnp.float32)
        z = xyz_ref[2, rows, :].astype(jnp.float32)
        r2 = x * x + y * y + z * z

        # c_m = Re[(x+iy)^m], s_m = Im[(x+iy)^m]; updated in place per m.
        c_m = jnp.ones_like(x)
        s_m = jnp.zeros_like(x)
        # Q_m^m = (2m-1)!! (no Condon-Shortley): a trace-time python float,
        # folded into the prefactors (never occupies a vreg).
        d_mm = 1.0
        # TODO(synk): for very large l_max the (2m-1)!! / r^l growth overflows
        # float32; folding the normalization into the Q recursion itself would
        # be needed there.  Fine for typical l_max <= ~10.

        for m in range(l_max + 1):
            if m > 0:
                c_m, s_m = c_m * x - s_m * y, s_m * x + c_m * y
                d_mm *= float(2 * m - 1)

            # Modified associated Legendre Q_l^m(z, r^2), 2-term sliding window:
            #   Q_m^m     = (2m-1)!!                       (python constant)
            #   Q_{m+1}^m = (2m+1) z Q_m^m
            #   Q_l^m     = ((2l-1) z Q_{l-1}^m - (l+m-1) r2 Q_{l-2}^m) / (l-m)
            q_prev2 = None
            q_prev1 = None
            for l in range(m, l_max + 1):
                if l == m:
                    q_lm = d_mm                               # python float
                elif l == m + 1:
                    q_lm = (float(2 * m + 1) * d_mm) * z      # array
                else:
                    q_lm = (
                        float(2 * l - 1) * z * q_prev1
                        - float(l + m - 1) * r2 * q_prev2
                    ) * (1.0 / float(l - m))
                q_prev2, q_prev1 = q_prev1, q_lm

                f = _prefactor(l, m)
                base_idx = l * l + l
                if m == 0:
                    if l == 0:
                        out_ref[base_idx, rows, :] = jnp.full_like(x, f).astype(odt)
                    else:
                        out_ref[base_idx, rows, :] = (f * q_lm).astype(odt)
                else:
                    base = f * q_lm   # float (l==m) or (8,128) array
                    out_ref[base_idx + m, rows, :] = (base * c_m).astype(odt)
                    out_ref[base_idx - m, rows, :] = (base * s_m).astype(odt)


def solid_harmonics(
    xyz: jax.Array,
    l_max: int,
    *,
    transposed_output: bool = False,
    tn: int = 8192,
) -> jax.Array:
    """Pallas equivalent of SolidHarmonics(l_max).forward(xyz); xyz: (N, 3).

    Returns (N, (l_max+1)^2) by default (PyTorch convention).  With
    transposed_output=True the ((l_max+1)^2, N) lane-dense kernel layout is
    returned directly, avoiding one extra HBM pass for consumers that can
    work transposed.
    """
    if tn % 1024 != 0:
        raise ValueError("tn must be a multiple of 1024 (8 sublanes x 128 lanes)")
    n = xyz.shape[0]
    s = (l_max + 1) ** 2
    if n == 0:
        empty = jnp.zeros((s, 0), xyz.dtype)
        return empty if transposed_output else empty.T

    # Shrink the tile for small inputs so padding work stays bounded (<1024 pts).
    tn_eff = min(tn, -(-n // 1024) * 1024)
    n_pad = -(-n // tn_eff) * tn_eff
    g = tn_eff // 128                    # sublane rows per tile (multiple of 8)
    grid = n_pad // tn_eff               # v7x: >= 2 steps whenever N > tn_eff

    # (N, 3) -> (3, n_pad) -> (3, n_pad//128, 128): point index lane-dense;
    # the reshape is a free row-major bitcast.
    if n_pad == n:
        xyz_t = xyz.T
    else:
        xyz_t = jnp.zeros((3, n_pad), xyz.dtype).at[:, :n].set(xyz.T)
    xyz_t = xyz_t.reshape(3, n_pad // 128, 128)

    out_t = pl.pallas_call(
        functools.partial(_solid_harmonics_kernel, l_max=l_max),
        out_shape=jax.ShapeDtypeStruct((s, n_pad // 128, 128), xyz.dtype),
        grid=(grid,),
        in_specs=[pl.BlockSpec((3, g, 128), lambda i: (0, i, 0))],
        out_specs=pl.BlockSpec((s, g, 128), lambda i: (0, i, 0)),
        compiler_params=pltpu.CompilerParams(dimension_semantics=("parallel",)),
    )(xyz_t)

    out_t = out_t.reshape(s, n_pad)[:, :n]   # free reshape; slice drops padding
    if transposed_output:
        return out_t
    return out_t.T   # back to PyTorch (N, S) convention


# TODO(synk): compute_with_gradients / compute_with_hessians (analytic dY/dxyz
# and Hessians from the C++ calculator) are not reproduced here; only forward().


def _solid_harmonics_ref(xyz: jax.Array, l_max: int) -> jax.Array:
    """Pure-JAX reference (same recursions, vectorized over N)."""
    x, y, z = xyz[:, 0], xyz[:, 1], xyz[:, 2]
    r2 = x * x + y * y + z * z
    s = (l_max + 1) ** 2
    out = [None] * s
    c = [jnp.ones_like(x)]
    sl = [jnp.zeros_like(x)]
    for m in range(1, l_max + 1):
        c.append(c[m - 1] * x - sl[m - 1] * y)
        sl.append(sl[m - 1] * x + c[m - 1] * y)
    Q = {(0, 0): jnp.ones_like(x)}
    for m in range(1, l_max + 1):
        Q[(m, m)] = float(2 * m - 1) * Q[(m - 1, m - 1)]
    for m in range(0, l_max):
        Q[(m + 1, m)] = float(2 * m + 1) * z * Q[(m, m)]
    for m in range(0, l_max + 1):
        for l in range(m + 2, l_max + 1):
            Q[(l, m)] = (
                float(2 * l - 1) * z * Q[(l - 1, m)]
                - float(l + m - 1) * r2 * Q[(l - 2, m)]
            ) / float(l - m)
    for l in range(l_max + 1):
        for m in range(l + 1):
            f = math.sqrt(
                (2 * l + 1) / (4.0 * math.pi)
                * math.factorial(l - m) / math.factorial(l + m)
            )
            if m == 0:
                out[l * l + l] = f * Q[(l, m)]
            else:
                f *= math.sqrt(2.0)
                out[l * l + l + m] = f * Q[(l, m)] * c[m]
                out[l * l + l - m] = f * Q[(l, m)] * sl[m]
    return jnp.stack(out, axis=-1)


if __name__ == "__main__":
    l_max = 4
    key = jax.random.PRNGKey(0)
    k1, k2 = jax.random.split(key)

    # Small demo input, matching the PyTorch forward signature (N, 3).
    xyz = jax.random.normal(k1, (8, 3), dtype=jnp.float32)
    sph = jax.block_until_ready(solid_harmonics(xyz, l_max))
    assert sph.shape == (8, (l_max + 1) ** 2)

    # --- analytic checks of the sphericart convention for l = 0, 1, 2 ---
    x, y, z = xyz[:, 0], xyz[:, 1], xyz[:, 2]
    r2 = x * x + y * y + z * z
    c0 = math.sqrt(1.0 / (4.0 * math.pi))
    c1 = math.sqrt(3.0 / (4.0 * math.pi))
    a2 = 0.5 * math.sqrt(15.0 / math.pi)
    b2 = 0.25 * math.sqrt(5.0 / math.pi)
    d2 = 0.25 * math.sqrt(15.0 / math.pi)
    ref012 = jnp.stack(
        [
            jnp.full_like(x, c0),          # l=0
            c1 * y, c1 * z, c1 * x,        # l=1: m=-1,0,1
            a2 * x * y,                    # l=2, m=-2
            a2 * y * z,                    # l=2, m=-1
            b2 * (3.0 * z * z - r2),       # l=2, m=0
            a2 * x * z,                    # l=2, m=1
            d2 * (x * x - y * y),          # l=2, m=2
        ],
        axis=-1,
    )
    assert jnp.allclose(sph[:, :9], ref012, atol=1e-4, rtol=1e-4)

    # --- full check against the pure-JAX reference (all l, m) ---
    assert jnp.allclose(sph, _solid_harmonics_ref(xyz, l_max), atol=1e-4, rtol=1e-4)

    # --- higher degree check ---
    sph6 = jax.block_until_ready(solid_harmonics(xyz, 6))
    assert jnp.allclose(sph6, _solid_harmonics_ref(xyz, 6), atol=1e-3, rtol=1e-4)

    # --- transposed-output path is consistent with the default layout ---
    sph_t = jax.block_until_ready(
        solid_harmonics(xyz, l_max, transposed_output=True)
    )
    assert jnp.allclose(sph_t.T, sph, atol=0.0, rtol=0.0)

    # --- padding + multi-chunk tile path (N not a multiple of 1024) ---
    xyz_big = jax.random.normal(k2, (1300, 3), dtype=jnp.float32)
    sph_big = jax.block_until_ready(solid_harmonics(xyz_big, l_max))
    assert sph_big.shape == (1300, (l_max + 1) ** 2)
    assert jnp.allclose(
        sph_big, _solid_harmonics_ref(xyz_big, l_max), atol=1e-4, rtol=1e-4
    )

    # --- multi-step grid path (tn override forces grid = 2) ---
    sph_big2 = jax.block_until_ready(solid_harmonics(xyz_big, l_max, tn=1024))
    assert jnp.allclose(sph_big2, sph_big, atol=0.0, rtol=0.0)

    print("KERNEL_OK")
</pallas_src>

<mosaic_0001>
module attributes {stable_mosaic.version = 11 : i64} {
  func.func @_solid_harmonics_kernel(%arg0: i32, %arg1: memref<3x8x128xf32, #tpu.memory_space<vmem>>, %arg2: memref<25x8x128xf32, #tpu.memory_space<vmem>>) attributes {dimension_semantics = [#tpu.dimension_semantics<parallel>], iteration_bounds = array<i64: 1>, scalar_prefetch = 0 : i64, scratch_operands = 0 : i64, tpu.core_type = #tpu.core_type<tc>, window_params = [{transform_indices = @transform_0, window_bounds = array<i64: 3, 8, 128>}, {transform_indices = @transform_1, window_bounds = array<i64: 25, 8, 128>}]} {
    %c0 = arith.constant 0 : index
    %c0_0 = arith.constant 0 : index
    %c0_1 = arith.constant 0 : index
    %0 = vector.load %arg1[%c0, %c0_0, %c0_1] : memref<3x8x128xf32, #tpu.memory_space<vmem>>, vector<1x8x128xf32>
    %1 = vector.shape_cast %0 : vector<1x8x128xf32> to vector<8x128xf32>
    %c1 = arith.constant 1 : index
    %c0_2 = arith.constant 0 : index
    %c0_3 = arith.constant 0 : index
    %2 = vector.load %arg1[%c1, %c0_2, %c0_3] : memref<3x8x128xf32, #tpu.memory_space<vmem>>, vector<1x8x128xf32>
    %3 = vector.shape_cast %2 : vector<1x8x128xf32> to vector<8x128xf32>
    %c2 = arith.constant 2 : index
    %c0_4 = arith.constant 0 : index
    %c0_5 = arith.constant 0 : index
    %4 = vector.load %arg1[%c2, %c0_4, %c0_5] : memref<3x8x128xf32, #tpu.memory_space<vmem>>, vector<1x8x128xf32>
    %5 = vector.shape_cast %4 : vector<1x8x128xf32> to vector<8x128xf32>
    %6 = arith.mulf %1, %1 : vector<8x128xf32>
    %7 = arith.mulf %3, %3 : vector<8x128xf32>
    %8 = arith.addf %6, %7 : vector<8x128xf32>
    %9 = arith.mulf %5, %5 : vector<8x128xf32>
    %10 = arith.addf %8, %9 : vector<8x128xf32>
    %cst = arith.constant 1.000000e+00 : f32
    %11 = vector.broadcast %cst : f32 to vector<8x128xf32>
    %cst_6 = arith.constant 0.000000e+00 : f32
    %12 = vector.broadcast %cst_6 : f32 to vector<8x128xf32>
    %cst_7 = arith.constant 0.282094806 : f32
    %13 = vector.broadcast %cst_7 : f32 to vector<8x128xf32>
    %c0_8 = arith.constant 0 : index
    %c0_9 = arith.constant 0 : index
    %c0_10 = arith.constant 0 : index
    %14 = vector.load %arg2[%c0_8, %c0_9, %c0_10] : memref<25x8x128xf32, #tpu.memory_space<vmem>>, vector<1x8x128xf32>
    %15 = vector.shape_cast %14 : vector<1x8x128xf32> to vector<8x128xf32>
    %16 = vector.shape_cast %13 : vector<8x128xf32> to vector<1x8x128xf32>
    tpu.vector_store %arg2[%c0_8, %c0_9, %c0_10], %16 {strides = array<i32>} : memref<25x8x128xf32, #tpu.memory_space<vmem>>, vector<1x8x128xf32>,
    %cst_11 = arith.constant 1.000000e+00 : f32
    %17 = vector.broadcast %cst_11 : f32 to vector<8x128xf32>
    %18 = arith.mulf %17, %5 : vector<8x128xf32>
    %cst_12 = arith.constant 0.488602519 : f32
    %19 = vector.broadcast %cst_12 : f32 to vector<8x128xf32>
    %20 = arith.mulf %19, %18 : vector<8x128xf32>
    %c2_13 = arith.constant 2 : index
    %c0_14 = arith.constant 0 : index
    %c0_15 = arith.constant 0 : index
    %21 = vector.load %arg2[%c2_13, %c0_14, %c0_15] : memref<25x8x128xf32, #tpu.memory_space<vmem>>, vector<1x8x128xf32>
    %22 = vector.shape_cast %21 : vector<1x8x128xf32> to vector<8x128xf32>
    %23 = vector.shape_cast %20 : vector<8x128xf32> to vector<1x8x128xf32>
    tpu.vector_store %arg2[%c2_13, %c0_14, %c0_15], %23 {strides = array<i32>} : memref<25x8x128xf32, #tpu.memory_space<vmem>>, vector<1x8x128xf32>,
    %cst_16 = arith.constant 3.000000e+00 : f32
    %24 = vector.broadcast %cst_16 : f32 to vector<8x128xf32>
    %25 = arith.mulf %24, %5 : vector<8x128xf32>
    %26 = arith.mulf %25, %18 : vector<8x128xf32>
    %cst_17 = arith.constant 1.000000e+00 : f32
    %27 = vector.broadcast %cst_17 : f32 to vector<8x128xf32>
    %28 = arith.mulf %27, %10 : vector<8x128xf32>
    %cst_18 = arith.constant 1.000000e+00 : f32
    %29 = vector.broadcast %cst_18 : f32 to vector<8x128xf32>
    %30 = arith.mulf %28, %29 : vector<8x128xf32>
    %31 = arith.subf %26, %30 : vector<8x128xf32>
    %cst_19 = arith.constant 5.000000e-01 : f32
    %32 = vector.broadcast %cst_19 : f32 to vector<8x128xf32>
    %33 = arith.mulf %31, %32 : vector<8x128xf32>
    %cst_20 = arith.constant 0.63078314 : f32
    %34 = vector.broadcast %cst_20 : f32 to vector<8x128xf32>
    %35 = arith.mulf %34, %33 : vector<8x128xf32>
    %c6 = arith.constant 6 : index
    %c0_21 = arith.constant 0 : index
    %c0_22 = arith.constant 0 : index
    %36 = vector.load %arg2[%c6, %c0_21, %c0_22] : memref<25x8x128xf32, #tpu.memory_space<vmem>>, vector<1x8x128xf32>
    %37 = vector.shape_cast %36 : vector<1x8x128xf32> to vector<8x128xf32>
    %38 = vector.shape_cast %35 : vector<8x128xf32> to vector<1x8x128xf32>
    tpu.vector_store %arg2[%c6, %c0_21, %c0_22], %38 {strides = array<i32>} : memref<25x8x128xf32, #tpu.memory_space<vmem>>, vector<1x8x128xf32>,
    %cst_23 = arith.constant 5.000000e+00 : f32
    %39 = vector.broadcast %cst_23 : f32 to vector<8x128xf32>
    %40 = arith.mulf %39, %5 : vector<8x128xf32>
    %41 = arith.mulf %40, %33 : vector<8x128xf32>
    %cst_24 = arith.constant 2.000000e+00 : f32
    %42 = vector.broadcast %cst_24 : f32 to vector<8x128xf32>
    %43 = arith.mulf %42, %10 : vector<8x128xf32>
    %44 = arith.mulf %43, %18 : vector<8x128xf32>
    %45 = arith.subf %41, %44 : vector<8x128xf32>
    %cst_25 = arith.constant 0.333333343 : f32
    %46 = vector.broadcast %cst_25 : f32 to vector<8x128xf32>
    %47 = arith.mulf %45, %46 : vector<8x128xf32>
    %cst_26 = arith.constant 0.746352672 : f32
    %48 = vector.broadcast %cst_26 : f32 to vector<8x128xf32>
    %49 = arith.mulf %48, %47 : vector<8x128xf32>
    %c12 = arith.constant 12 : index
    %c0_27 = arith.constant 0 : index
    %c0_28 = arith.constant 0 : index
    %50 = vector.load %arg2[%c12, %c0_27, %c0_28] : memref<25x8x128xf32, #tpu.memory_space<vmem>>, vector<1x8x128xf32>
    %51 = vector.shape_cast %50 : vector<1x8x128xf32> to vector<8x128xf32>
    %52 = vector.shape_cast %49 : vector<8x128xf32> to vector<1x8x128xf32>
    tpu.vector_store %arg2[%c12, %c0_27, %c0_28], %52 {strides = array<i32>} : memref<25x8x128xf32, #tpu.memory_space<vmem>>, vector<1x8x128xf32>,
    %cst_29 = arith.constant 7.000000e+00 : f32
    %53 = vector.broadcast %cst_29 : f32 to vector<8x128xf32>
    %54 = arith.mulf %53, %5 : vector<8x128xf32>
    %55 = arith.mulf %54, %47 : vector<8x128xf32>
    %cst_30 = arith.constant 3.000000e+00 : f32
    %56 = vector.broadcast %cst_30 : f32 to vector<8x128xf32>
    %57 = arith.mulf %56, %10 : vector<8x128xf32>
    %58 = arith.mulf %57, %33 : vector<8x128xf32>
    %59 = arith.subf %55, %58 : vector<8x128xf32>
    %cst_31 = arith.constant 2.500000e-01 : f32
    %60 = vector.broadcast %cst_31 : f32 to vector<8x128xf32>
    %61 = arith.mulf %59, %60 : vector<8x128xf32>
    %cst_32 = arith.constant 0.846284389 : f32
    %62 = vector.broadcast %cst_32 : f32 to vector<8x128xf32>
    %63 = arith.mulf %62, %61 : vector<8x128xf32>
    %c20 = arith.constant 20 : index
    %c0_33 = arith.constant 0 : index
    %c0_34 = arith.constant 0 : index
    %64 = vector.load %arg2[%c20, %c0_33, %c0_34] : memref<25x8x128xf32, #tpu.memory_space<vmem>>, vector<1x8x128xf32>
    %65 = vector.shape_cast %64 : vector<1x8x128xf32> to vector<8x128xf32>
    %66 = vector.shape_cast %63 : vector<8x128xf32> to vector<1x8x128xf32>
    tpu.vector_store %arg2[%c20, %c0_33, %c0_34], %66 {strides = array<i32>} : memref<25x8x128xf32, #tpu.memory_space<vmem>>, vector<1x8x128xf32>,
    %67 = arith.mulf %11, %1 : vector<8x128xf32>
    %68 = arith.mulf %12, %3 : vector<8x128xf32>
    %69 = arith.subf %67, %68 : vector<8x128xf32>
    %70 = arith.mulf %12, %1 : vector<8x128xf32>
    %71 = arith.mulf %11, %3 : vector<8x128xf32>
    %72 = arith.addf %70, %71 : vector<8x128xf32>
    %cst_35 = arith.constant 0.488602519 : f32
    %73 = vector.broadcast %cst_35 : f32 to vector<8x128xf32>
    %74 = arith.mulf %73, %69 : vector<8x128xf32>
    %c3 = arith.constant 3 : index
    %c0_36 = arith.constant 0 : index
    %c0_37 = arith.constant 0 : index
    %75 = vector.load %arg2[%c3, %c0_36, %c0_37] : memref<25x8x128xf32, #tpu.memory_space<vmem>>, vector<1x8x128xf32>
    %76 = vector.shape_cast %75 : vector<1x8x128xf32> to vector<8x128xf32>
    %77 = vector.shape_cast %74 : vector<8x128xf32> to vector<1x8x128xf32>
    tpu.vector_store %arg2[%c3, %c0_36, %c0_37], %77 {strides = array<i32>} : memref<25x8x128xf32, #tpu.memory_space<vmem>>, vector<1x8x128xf32>,
    %cst_38 = arith.constant 0.488602519 : f32
    %78 = vector.broadcast %cst_38 : f32 to vector<8x128xf32>
    %79 = arith.mulf %78, %72 : vector<8x128xf32>
    %c1_39 = arith.constant 1 : index
    %c0_40 = arith.constant 0 : index
    %c0_41 = arith.constant 0 : index
    %80 = vector.load %arg2[%c1_39, %c0_40, %c0_41] : memref<25x8x128xf32, #tpu.memory_space<vmem>>, vector<1x8x128xf32>
    %81 = vector.shape_cast %80 : vector<1x8x128xf32> to vector<8x128xf32>
    %82 = vector.shape_cast %79 : vector<8x128xf32> to vector<1x8x128xf32>
    tpu.vector_store %arg2[%c1_39, %c0_40, %c0_41], %82 {strides = array<i32>} : memref<25x8x128xf32, #tpu.memory_space<vmem>>, vector<1x8x128xf32>,
    %cst_42 = arith.constant 3.000000e+00 : f32
    %83 = vector.broadcast %cst_42 : f32 to vector<8x128xf32>
    %84 = arith.mulf %83, %5 : vector<8x128xf32>
    %cst_43 = arith.constant 0.3641828 : f32
    %85 = vector.broadcast %cst_43 : f32 to vector<8x128xf32>
    %86 = arith.mulf %85, %84 : vector<8x128xf32>
    %87 = arith.mulf %86, %69 : vector<8x128xf32>
    %c7 = arith.constant 7 : index
    %c0_44 = arith.constant 0 : index
    %c0_45 = arith.constant 0 : index
    %88 = vector.load %arg2[%c7, %c0_44, %c0_45] : memref<25x8x128xf32, #tpu.memory_space<vmem>>, vector<1x8x128xf32>
    %89 = vector.shape_cast %88 : vector<1x8x128xf32> to vector<8x128xf32>
    %90 = vector.shape_cast %87 : vector<8x128xf32> to vector<1x8x128xf32>
    tpu.vector_store %arg2[%c7, %c0_44, %c0_45], %90 {strides = array<i32>} : memref<25x8x128xf32, #tpu.memory_space<vmem>>, vector<1x8x128xf32>,
    %91 = arith.mulf %86, %72 : vector<8x128xf32>
    %c5 = arith.constant 5 : index
    %c0_46 = arith.constant 0 : index
    %c0_47 = arith.constant 0 : index
    %92 = vector.load %arg2[%c5, %c0_46, %c0_47] : memref<25x8x128xf32, #tpu.memory_space<vmem>>, vector<1x8x128xf32>
    %93 = vector.shape_cast %92 : vector<1x8x128xf32> to vector<8x128xf32>
    %94 = vector.shape_cast %91 : vector<8x128xf32> to vector<1x8x128xf32>
    tpu.vector_store %arg2[%c5, %c0_46, %c0_47], %94 {strides = array<i32>} : memref<25x8x128xf32, #tpu.memory_space<vmem>>, vector<1x8x128xf32>,
    %cst_48 = arith.constant 5.000000e+00 : f32
    %95 = vector.broadcast %cst_48 : f32 to vector<8x128xf32>
    %96 = arith.mulf %95, %5 : vector<8x128xf32>
    %97 = arith.mulf %96, %84 : vector<8x128xf32>
    %cst_49 = arith.constant 3.000000e+00 : f32
    %98 = vector.broadcast %cst_49 : f32 to vector<8x128xf32>
    %99 = arith.mulf %98, %10 : vector<8x128xf32>
    %cst_50 = arith.constant 1.000000e+00 : f32
    %100 = vector.broadcast %cst_50 : f32 to vector<8x128xf32>
    %101 = arith.mulf %99, %100 : vector<8x128xf32>
    %102 = arith.subf %97, %101 : vector<8x128xf32>
    %cst_51 = arith.constant 5.000000e-01 : f32
    %103 = vector.broadcast %cst_51 : f32 to vector<8x128xf32>
    %104 = arith.mulf %102, %103 : vector<8x128xf32>
    %cst_52 = arith.constant 0.304697186 : f32
    %105 = vector.broadcast %cst_52 : f32 to vector<8x128xf32>
    %106 = arith.mulf %105, %104 : vector<8x128xf32>
    %107 = arith.mulf %106, %69 : vector<8x128xf32>
    %c13 = arith.constant 13 : index
    %c0_53 = arith.constant 0 : index
    %c0_54 = arith.constant 0 : index
    %108 = vector.load %arg2[%c13, %c0_53, %c0_54] : memref<25x8x128xf32, #tpu.memory_space<vmem>>, vector<1x8x128xf32>
    %109 = vector.shape_cast %108 : vector<1x8x128xf32> to vector<8x128xf32>
    %110 = vector.shape_cast %107 : vector<8x128xf32> to vector<1x8x128xf32>
    tpu.vector_store %arg2[%c13, %c0_53, %c0_54], %110 {strides = array<i32>} : memref<25x8x128xf32, #tpu.memory_space<vmem>>, vector<1x8x128xf32>,
    %111 = arith.mulf %106, %72 : vector<8x128xf32>
    %c11 = arith.constant 11 : index
    %c0_55 = arith.constant 0 : index
    %c0_56 = arith.constant 0 : index
    %112 = vector.load %arg2[%c11, %c0_55, %c0_56] : memref<25x8x128xf32, #tpu.memory_space<vmem>>, vector<1x8x128xf32>
    %113 = vector.shape_cast %112 : vector<1x8x128xf32> to vector<8x128xf32>
    %114 = vector.shape_cast %111 : vector<8x128xf32> to vector<1x8x128xf32>
    tpu.vector_store %arg2[%c11, %c0_55, %c0_56], %114 {strides = array<i32>} : memref<25x8x128xf32, #tpu.memory_space<vmem>>, vector<1x8x128xf32>,
    %cst_57 = arith.constant 7.000000e+00 : f32
    %115 = vector.broadcast %cst_57 : f32 to vector<8x128xf32>
    %116 = arith.mulf %115, %5 : vector<8x128xf32>
    %117 = arith.mulf %116, %104 : vector<8x128xf32>
    %cst_58 = arith.constant 4.000000e+00 : f32
    %118 = vector.broadcast %cst_58 : f32 to vector<8x128xf32>
    %119 = arith.mulf %118, %10 : vector<8x128xf32>
    %120 = arith.mulf %119, %84 : vector<8x128xf32>
    %121 = arith.subf %117, %120 : vector<8x128xf32>
    %cst_59 = arith.constant 0.333333343 : f32
    %122 = vector.broadcast %cst_59 : f32 to vector<8x128xf32>
    %123 = arith.mulf %121, %122 : vector<8x128xf32>
    %cst_60 = arith.constant 0.267618626 : f32
    %124 = vector.broadcast %cst_60 : f32 to vector<8x128xf32>
    %125 = arith.mulf %124, %123 : vector<8x128xf32>
    %126 = arith.mulf %125, %69 : vector<8x128xf32>
    %c21 = arith.constant 21 : index
    %c0_61 = arith.constant 0 : index
    %c0_62 = arith.constant 0 : index
    %127 = vector.load %arg2[%c21, %c0_61, %c0_62] : memref<25x8x128xf32, #tpu.memory_space<vmem>>, vector<1x8x128xf32>
    %128 = vector.shape_cast %127 : vector<1x8x128xf32> to vector<8x128xf32>
    %129 = vector.shape_cast %126 : vector<8x128xf32> to vector<1x8x128xf32>
    tpu.vector_store %arg2[%c21, %c0_61, %c0_62], %129 {strides = array<i32>} : memref<25x8x128xf32, #tpu.memory_space<vmem>>, vector<1x8x128xf32>,
    %130 = arith.mulf %125, %72 : vector<8x128xf32>
    %c19 = arith.constant 19 : index
    %c0_63 = arith.constant 0 : index
    %c0_64 = arith.constant 0 : index
    %131 = vector.load %arg2[%c19, %c0_63, %c0_64] : memref<25x8x128xf32, #tpu.memory_space<vmem>>, vector<1x8x128xf32>
    %132 = vector.shape_cast %131 : vector<1x8x128xf32> to vector<8x128xf32>
    %133 = vector.shape_cast %130 : vector<8x128xf32> to vector<1x8x128xf32>
    tpu.vector_store %arg2[%c19, %c0_63, %c0_64], %133 {strides = array<i32>} : memref<25x8x128xf32, #tpu.memory_space<vmem>>, vector<1x8x128xf32>,
    %134 = arith.mulf %69, %1 : vector<8x128xf32>
    %135 = arith.mulf %72, %3 : vector<8x128xf32>
    %136 = arith.subf %134, %135 : vector<8x128xf32>
    %137 = arith.mulf %72, %1 : vector<8x128xf32>
    %138 = arith.mulf %69, %3 : vector<8x128xf32>
    %139 = arith.addf %137, %138 : vector<8x128xf32>
    %cst_65 = arith.constant 0.546274245 : f32
    %140 = vector.broadcast %cst_65 : f32 to vector<8x128xf32>
    %141 = arith.mulf %140, %136 : vector<8x128xf32>
    %c8 = arith.constant 8 : index
    %c0_66 = arith.constant 0 : index
    %c0_67 = arith.constant 0 : index
    %142 = vector.load %arg2[%c8, %c0_66, %c0_67] : memref<25x8x128xf32, #tpu.memory_space<vmem>>, vector<1x8x128xf32>
    %143 = vector.shape_cast %142 : vector<1x8x128xf32> to vector<8x128xf32>
    %144 = vector.shape_cast %141 : vector<8x128xf32> to vector<1x8x128xf32>
    tpu.vector_store %arg2[%c8, %c0_66, %c0_67], %144 {strides = array<i32>} : memref<25x8x128xf32, #tpu.memory_space<vmem>>, vector<1x8x128xf32>,
    %cst_68 = arith.constant 0.546274245 : f32
    %145 = vector.broadcast %cst_68 : f32 to vector<8x128xf32>
    %146 = arith.mulf %145, %139 : vector<8x128xf32>
    %c4 = arith.constant 4 : index
    %c0_69 = arith.constant 0 : index
    %c0_70 = arith.constant 0 : index
    %147 = vector.load %arg2[%c4, %c0_69, %c0_70] : memref<25x8x128xf32, #tpu.memory_space<vmem>>, vector<1x8x128xf32>
    %148 = vector.shape_cast %147 : vector<1x8x128xf32> to vector<8x128xf32>
    %149 = vector.shape_cast %146 : vector<8x128xf32> to vector<1x8x128xf32>
    tpu.vector_store %arg2[%c4, %c0_69, %c0_70], %149 {strides = array<i32>} : memref<25x8x128xf32, #tpu.memory_space<vmem>>, vector<1x8x128xf32>,
    %cst_71 = arith.constant 1.500000e+01 : f32
    %150 = vector.broadcast %cst_71 : f32 to vector<8x128xf32>
    %151 = arith.mulf %150, %5 : vector<8x128xf32>
    %cst_72 = arith.constant 0.0963537171 : f32
    %152 = vector.broadcast %cst_72 : f32 to vector<8x128xf32>
    %153 = arith.mulf %152, %151 : vector<8x128xf32>
    %154 = arith.mulf %153, %136 : vector<8x128xf32>
    %c14 = arith.constant 14 : index
    %c0_73 = arith.constant 0 : index
    %c0_74 = arith.constant 0 : index
    %155 = vector.load %arg2[%c14, %c0_73, %c0_74] : memref<25x8x128xf32, #tpu.memory_space<vmem>>, vector<1x8x128xf32>
    %156 = vector.shape_cast %155 : vector<1x8x128xf32> to vector<8x128xf32>
    %157 = vector.shape_cast %154 : vector<8x128xf32> to vector<1x8x128xf32>
    tpu.vector_store %arg2[%c14, %c0_73, %c0_74], %157 {strides = array<i32>} : memref<25x8x128xf32, #tpu.memory_space<vmem>>, vector<1x8x128xf32>,
    %158 = arith.mulf %153, %139 : vector<8x128xf32>
    %c10 = arith.constant 10 : index
    %c0_75 = arith.constant 0 : index
    %c0_76 = arith.constant 0 : index
    %159 = vector.load %arg2[%c10, %c0_75, %c0_76] : memref<25x8x128xf32, #tpu.memory_space<vmem>>, vector<1x8x128xf32>
    %160 = vector.shape_cast %159 : vector<1x8x128xf32> to vector<8x128xf32>
    %161 = vector.shape_cast %158 : vector<8x128xf32> to vector<1x8x128xf32>
    tpu.vector_store %arg2[%c10, %c0_75, %c0_76], %161 {strides = array<i32>} : memref<25x8x128xf32, #tpu.memory_space<vmem>>, vector<1x8x128xf32>,
    %cst_77 = arith.constant 7.000000e+00 : f32
    %162 = vector.broadcast %cst_77 : f32 to vector<8x128xf32>
    %163 = arith.mulf %162, %5 : vector<8x128xf32>
    %164 = arith.mulf %163, %151 : vector<8x128xf32>
    %cst_78 = arith.constant 5.000000e+00 : f32
    %165 = vector.broadcast %cst_78 : f32 to vector<8x128xf32>
    %166 = arith.mulf %165, %10 : vector<8x128xf32>
    %cst_79 = arith.constant 3.000000e+00 : f32
    %167 = vector.broadcast %cst_79 : f32 to vector<8x128xf32>
    %168 = arith.mulf %166, %167 : vector<8x128xf32>
    %169 = arith.subf %164, %168 : vector<8x128xf32>
    %cst_80 = arith.constant 5.000000e-01 : f32
    %170 = vector.broadcast %cst_80 : f32 to vector<8x128xf32>
    %171 = arith.mulf %169, %170 : vector<8x128xf32>
    %cst_81 = arith.constant 0.063078314 : f32
    %172 = vector.broadcast %cst_81 : f32 to vector<8x128xf32>
    %173 = arith.mulf %172, %171 : vector<8x128xf32>
    %174 = arith.mulf %173, %136 : vector<8x128xf32>
    %c22 = arith.constant 22 : index
    %c0_82 = arith.constant 0 : index
    %c0_83 = arith.constant 0 : index
    %175 = vector.load %arg2[%c22, %c0_82, %c0_83] : memref<25x8x128xf32, #tpu.memory_space<vmem>>, vector<1x8x128xf32>
    %176 = vector.shape_cast %175 : vector<1x8x128xf32> to vector<8x128xf32>
    %177 = vector.shape_cast %174 : vector<8x128xf32> to vector<1x8x128xf32>
    tpu.vector_store %arg2[%c22, %c0_82, %c0_83], %177 {strides = array<i32>} : memref<25x8x128xf32, #tpu.memory_space<vmem>>, vector<1x8x128xf32>,
    %178 = arith.mulf %173, %139 : vector<8x128xf32>
    %c18 = arith.constant 18 : index
    %c0_84 = arith.constant 0 : index
    %c0_85 = arith.constant 0 : index
    %179 = vector.load %arg2[%c18, %c0_84, %c0_85] : memref<25x8x128xf32, #tpu.memory_space<vmem>>, vector<1x8x128xf32>
    %180 = vector.shape_cast %179 : vector<1x8x128xf32> to vector<8x128xf32>
    %181 = vector.shape_cast %178 : vector<8x128xf32> to vector<1x8x128xf32>
    tpu.vector_store %arg2[%c18, %c0_84, %c0_85], %181 {strides = array<i32>} : memref<25x8x128xf32, #tpu.memory_space<vmem>>, vector<1x8x128xf32>,
    %182 = arith.mulf %136, %1 : vector<8x128xf32>
    %183 = arith.mulf %139, %3 : vector<8x128xf32>
    %184 = arith.subf %182, %183 : vector<8x128xf32>
    %185 = arith.mulf %139, %1 : vector<8x128xf32>
    %186 = arith.mulf %136, %3 : vector<8x128xf32>
    %187 = arith.addf %185, %186 : vector<8x128xf32>
    %cst_86 = arith.constant 0.590043604 : f32
    %188 = vector.broadcast %cst_86 : f32 to vector<8x128xf32>
    %189 = arith.mulf %188, %184 : vector<8x128xf32>
    %c15 = arith.constant 15 : index
    %c0_87 = arith.constant 0 : index
    %c0_88 = arith.constant 0 : index
    %190 = vector.load %arg2[%c15, %c0_87, %c0_88] : memref<25x8x128xf32, #tpu.memory_space<vmem>>, vector<1x8x128xf32>
    %191 = vector.shape_cast %190 : vector<1x8x128xf32> to vector<8x128xf32>
    %192 = vector.shape_cast %189 : vector<8x128xf32> to vector<1x8x128xf32>
    tpu.vector_store %arg2[%c15, %c0_87, %c0_88], %192 {strides = array<i32>} : memref<25x8x128xf32, #tpu.memory_space<vmem>>, vector<1x8x128xf32>,
    %cst_89 = arith.constant 0.590043604 : f32
    %193 = vector.broadcast %cst_89 : f32 to vector<8x128xf32>
    %194 = arith.mulf %193, %187 : vector<8x128xf32>
    %c9 = arith.constant 9 : index
    %c0_90 = arith.constant 0 : index
    %c0_91 = arith.constant 0 : index
    %195 = vector.load %arg2[%c9, %c0_90, %c0_91] : memref<25x8x128xf32, #tpu.memory_space<vmem>>, vector<1x8x128xf32>
    %196 = vector.shape_cast %195 : vector<1x8x128xf32> to vector<8x128xf32>
    %197 = vector.shape_cast %194 : vector<8x128xf32> to vector<1x8x128xf32>
    tpu.vector_store %arg2[%c9, %c0_90, %c0_91], %197 {strides = array<i32>} : memref<25x8x128xf32, #tpu.memory_space<vmem>>, vector<1x8x128xf32>,
    %cst_92 = arith.constant 1.050000e+02 : f32
    %198 = vector.broadcast %cst_92 : f32 to vector<8x128xf32>
    %199 = arith.mulf %198, %5 : vector<8x128xf32>
    %cst_93 = arith.constant 0.0168583877 : f32
    %200 = vector.broadcast %cst_93 : f32 to vector<8x128xf32>
    %201 = arith.mulf %200, %199 : vector<8x128xf32>
    %202 = arith.mulf %201, %184 : vector<8x128xf32>
    %c23 = arith.constant 23 : index
    %c0_94 = arith.constant 0 : index
    %c0_95 = arith.constant 0 : index
    %203 = vector.load %arg2[%c23, %c0_94, %c0_95] : memref<25x8x128xf32, #tpu.memory_space<vmem>>, vector<1x8x128xf32>
    %204 = vector.shape_cast %203 : vector<1x8x128xf32> to vector<8x128xf32>
    %205 = vector.shape_cast %202 : vector<8x128xf32> to vector<1x8x128xf32>
    tpu.vector_store %arg2[%c23, %c0_94, %c0_95], %205 {strides = array<i32>} : memref<25x8x128xf32, #tpu.memory_space<vmem>>, vector<1x8x128xf32>,
    %206 = arith.mulf %201, %187 : vector<8x128xf32>
    %c17 = arith.constant 17 : index
    %c0_96 = arith.constant 0 : index
    %c0_97 = arith.constant 0 : index
    %207 = vector.load %arg2[%c17, %c0_96, %c0_97] : memref<25x8x128xf32, #tpu.memory_space<vmem>>, vector<1x8x128xf32>
    %208 = vector.shape_cast %207 : vector<1x8x128xf32> to vector<8x128xf32>
    %209 = vector.shape_cast %206 : vector<8x128xf32> to vector<1x8x128xf32>
    tpu.vector_store %arg2[%c17, %c0_96, %c0_97], %209 {strides = array<i32>} : memref<25x8x128xf32, #tpu.memory_space<vmem>>, vector<1x8x128xf32>,
    %210 = arith.mulf %184, %1 : vector<8x128xf32>
    %211 = arith.mulf %187, %3 : vector<8x128xf32>
    %212 = arith.subf %210, %211 : vector<8x128xf32>
    %213 = arith.mulf %187, %1 : vector<8x128xf32>
    %214 = arith.mulf %184, %3 : vector<8x128xf32>
    %215 = arith.addf %213, %214 : vector<8x128xf32>
    %cst_98 = arith.constant 0.625835716 : f32
    %216 = vector.broadcast %cst_98 : f32 to vector<8x128xf32>
    %217 = arith.mulf %216, %212 : vector<8x128xf32>
    %c24 = arith.constant 24 : index
    %c0_99 = arith.constant 0 : index
    %c0_100 = arith.constant 0 : index
    %218 = vector.load %arg2[%c24, %c0_99, %c0_100] : memref<25x8x128xf32, #tpu.memory_space<vmem>>, vector<1x8x128xf32>
    %219 = vector.shape_cast %218 : vector<1x8x128xf32> to vector<8x128xf32>
    %220 = vector.shape_cast %217 : vector<8x128xf32> to vector<1x8x128xf32>
    tpu.vector_store %arg2[%c24, %c0_99, %c0_100], %220 {strides = array<i32>} : memref<25x8x128xf32, #tpu.memory_space<vmem>>, vector<1x8x128xf32>,
    %cst_101 = arith.constant 0.625835716 : f32
    %221 = vector.broadcast %cst_101 : f32 to vector<8x128xf32>
    %222 = arith.mulf %221, %215 : vector<8x128xf32>
    %c16 = arith.constant 16 : index
    %c0_102 = arith.constant 0 : index
    %c0_103 = arith.constant 0 : index
    %223 = vector.load %arg2[%c16, %c0_102, %c0_103] : memref<25x8x128xf32, #tpu.memory_space<vmem>>, vector<1x8x128xf32>
    %224 = vector.shape_cast %223 : vector<1x8x128xf32> to vector<8x128xf32>
    %225 = vector.shape_cast %222 : vector<8x128xf32> to vector<1x8x128xf32>
    tpu.vector_store %arg2[%c16, %c0_102, %c0_103], %225 {strides = array<i32>} : memref<25x8x128xf32, #tpu.memory_space<vmem>>, vector<1x8x128xf32>,
    return
  }
  func.func @transform_0(%arg0: i32) -> (i32, i32, i32) {
    %c0_i32 = arith.constant 0 : i32
    %c0_i32_0 = arith.constant 0 : i32
    %c0_i32_1 = arith.constant 0 : i32
    return %c0_i32, %arg0, %c0_i32_0 : i32, i32, i32
  }
  func.func @transform_1(%arg0: i32) -> (i32, i32, i32) {
    %c0_i32 = arith.constant 0 : i32
    %c0_i32_0 = arith.constant 0 : i32
    %c0_i32_1 = arith.constant 0 : i32
    return %c0_i32, %arg0, %c0_i32_0 : i32, i32, i32
  }
}

</mosaic_0001>

<llo_original>
// kernel: tpu_custom_call.1
$region0: #{tpu_custom_call.1}
  #allocation0 [shape = 'u32[]', space=smem, size = 0x4, offset = 0x4, fixed_abs, tag = 'smem constant byte address 0x4 - core index']
  #allocation1 [shape = 'u32[144,128]{1,0:T(1,128)}', space=vmem, size = 0x12000, scoped, tag = 'internal scratch']
  %s0 = inlined_call_operand.hbm [shape: f32[3,8,128], index: 0, kind: input, shape index: {}]
  %s1 = inlined_call_operand.hbm [shape: f32[25,8,128], index: 1, kind: output, shape index: {}]
  %s2 = sld [smem:[#allocation0]]
  $region18: #{tpu_custom_call.1} parent=0
    _
  %s4 = ssub.s32 1, %s2
  %s5 = scalar_select 0, %s4, %s2
  $region1: #{tpu_custom_call.1} parent=0
    #allocation2 [shape = 'u8[12288]{0}', space=vmem, size = 0x3000, scoped, tag = 'input window, operand 0, single buffered']
    #allocation3 [shape = 's32[1]{0}', space=sflag, size = 0x4, scoped, tag = 'scoped memory for tpu_custom_call.1']
    #allocation4 [shape = 's32[1]{0}', space=sflag, size = 0x4, scoped, tag = 'scoped memory for tpu_custom_call.1']
    #allocation5 [shape = 'u8[102400]{0}', space=vmem, size = 0x19000, scoped, tag = 'output window, operand 0, single buffered']
    %6 = vsyncpa [#allocation3], 0
    %7 = vsyncpa [#allocation4], 0
    // Predicated region
    $region2: #{tpu_custom_call.1} parent=1 // pred_check
      _
    $region3: #{tpu_custom_call.1} parent=1 // pred_check_branch
      %9 = sbr.rel (0) target = $region5
    $region4: #{tpu_custom_call.1} parent=1 // pred_region
      %s11 = ssub.s32 384, 384
      %12 = vsyncadd [#allocation3], %s11
      %s13 = sshll.u32 [#allocation2], 4
      %s14 = int_to_ptr.vmem [resolvable:$true] %s13
      %19 = dma.hbm_to_vmem [thread:$0]  %s0, 384, %s14, [#allocation3], 128, 128, 8
    $region5: #{tpu_custom_call.1} parent=1 // pred_fallthru
      _
    // Predicated region
    $region6: #{tpu_custom_call.1} parent=1 // pred_check
      _
    $region7: #{tpu_custom_call.1} parent=1 // pred_check_branch
      %21 = sbr.rel (0) target = $region9
    $region8: #{tpu_custom_call.1} parent=1 // pred_region
      %22 = dma.done [#allocation3], 384
    $region9: #{tpu_custom_call.1} parent=1 // pred_fallthru
      _
    %v23 = vld [vmem:[#allocation2] sm:$0xff]
    %s24 = scalar_lea.vmem [#allocation2], 8
    %v25 = vld [vmem:[%s24] sm:$0xff]
    %s26 = scalar_lea.vmem [#allocation2], 16
    %v27 = vld [vmem:[%s26] sm:$0xff]
    %v28 = vmul.f32 %v23, %v23
    %v29 = vmul.f32 %v25, %v25
    %v30 = vadd.f32 %v28, %v29
    %v31 = vmul.f32 %v27, %v27
    %v32 = vadd.f32 %v30, %v31
    %33 = vst [vmem:[#allocation5] sm:$0xff] 0.2820948
    %v34 = vmul.f32 %v27, 0.48860252
    %s35 = scalar_lea.vmem [#allocation5], 16
    %36 = vst [vmem:[%s35] sm:$0xff] %v34
    %v37 = vmul.f32 %v27, 3.0
    %v38 = vmul.f32 %v37, %v27
    %v39 = vsub.f32 %v38, %v32
    %v40 = vmul.f32 %v39, 0.5
    %v41 = vmul.f32 %v40, 0.63078314
    %s42 = scalar_lea.vmem [#allocation5], 48
    %43 = vst [vmem:[%s42] sm:$0xff] %v41
    %v44 = vmul.f32 %v27, 5.0
    %v45 = vmul.f32 %v44, %v40
    %v46 = vmul.f32 %v32, 2.0
    %v47 = vmul.f32 %v46, %v27
    %v48 = vsub.f32 %v45, %v47
    %v49 = vmul.f32 %v48, 0.33333334
    %v50 = vmul.f32 %v49, 0.7463527
    %s51 = scalar_lea.vmem [#allocation5], 96
    %52 = vst [vmem:[%s51] sm:$0xff] %v50
    %v53 = vmul.f32 %v27, 7.0
    %v54 = vmul.f32 %v53, %v49
    %v55 = vmul.f32 %v32, 3.0
    %v56 = vmul.f32 %v55, %v40
    %v57 = vsub.f32 %v54, %v56
    %v58 = vmul.f32 %v57, 0.25
    %v59 = vmul.f32 %v58, 0.8462844
    %s60 = scalar_lea.vmem [#allocation5], 160
    %61 = vst [vmem:[%s60] sm:$0xff] %v59
    %v62 = vmul.f32 %v25, 0.0
    %v63 = vsub.f32 %v23, %v62
    %v64 = vmul.f32 %v23, 0.0
    %v65 = vadd.f32 %v64, %v25
    %v66 = vmul.f32 %v63, 0.48860252
    %s67 = scalar_lea.vmem [#allocation5], 24
    %68 = vst [vmem:[%s67] sm:$0xff] %v66
    %v69 = vmul.f32 %v65, 0.48860252
    %s70 = scalar_lea.vmem [#allocation5], 8
    %71 = vst [vmem:[%s70] sm:$0xff] %v69
    %v72 = vmul.f32 %v37, 0.3641828
    %v73 = vmul.f32 %v72, %v63
    %s74 = scalar_lea.vmem [#allocation5], 56
    %75 = vst [vmem:[%s74] sm:$0xff] %v73
    %v76 = vmul.f32 %v72, %v65
    %s77 = scalar_lea.vmem [#allocation5], 40
    %78 = vst [vmem:[%s77] sm:$0xff] %v76
    %v79 = vmul.f32 %v44, %v37
    %v80 = vsub.f32 %v79, %v55
    %v81 = vmul.f32 %v80, 0.5
    %v82 = vmul.f32 %v81, 0.3046972
    %v83 = vmul.f32 %v82, %v63
    %s84 = scalar_lea.vmem [#allocation5], 104
    %85 = vst [vmem:[%s84] sm:$0xff] %v83
    %v86 = vmul.f32 %v82, %v65
    %s87 = scalar_lea.vmem [#allocation5], 88
    %88 = vst [vmem:[%s87] sm:$0xff] %v86
    %v89 = vmul.f32 %v53, %v81
    %v90 = vmul.f32 %v32, 4.0
    %v91 = vmul.f32 %v90, %v37
    %v92 = vsub.f32 %v89, %v91
    %v93 = vmul.f32 %v92, 0.33333334
    %v94 = vmul.f32 %v93, 0.26761863
    %v95 = vmul.f32 %v94, %v63
    %s96 = scalar_lea.vmem [#allocation5], 168
    %97 = vst [vmem:[%s96] sm:$0xff] %v95
    %v98 = vmul.f32 %v94, %v65
    %s99 = scalar_lea.vmem [#allocation5], 152
    %100 = vst [vmem:[%s99] sm:$0xff] %v98
    %v101 = vmul.f32 %v63, %v23
    %v102 = vmul.f32 %v65, %v25
    %v103 = vsub.f32 %v101, %v102
    %v104 = vmul.f32 %v65, %v23
    %v105 = vmul.f32 %v63, %v25
    %v106 = vadd.f32 %v104, %v105
    %v107 = vmul.f32 %v103, 0.54627424
    %s108 = scalar_lea.vmem [#allocation5], 64
    %109 = vst [vmem:[%s108] sm:$0xff] %v107
    %v110 = vmul.f32 %v106, 0.54627424
    %s111 = scalar_lea.vmem [#allocation5], 32
    %112 = vst [vmem:[%s111] sm:$0xff] %v110
    %v113 = vmul.f32 %v27, 15.0
    %v114 = vmul.f32 %v113, 0.09635372
    %v115 = vmul.f32 %v114, %v103
    %s116 = scalar_lea.vmem [#allocation5], 112
    %117 = vst [vmem:[%s116] sm:$0xff] %v115
    %v118 = vmul.f32 %v114, %v106
    %s119 = scalar_lea.vmem [#allocation5], 80
    %120 = vst [vmem:[%s119] sm:$0xff] %v118
    %v121 = vmul.f32 %v53, %v113
    %v122 = vmul.f32 %v32, 5.0
    %v123 = vmul.f32 %v122, 3.0
    %v124 = vsub.f32 %v121, %v123
    %v125 = vmul.f32 %v124, 0.5
    %v126 = vmul.f32 %v125, 0.063078314
    %v127 = vmul.f32 %v126, %v103
    %s128 = scalar_lea.vmem [#allocation5], 176
    %129 = vst [vmem:[%s128] sm:$0xff] %v127
    %v130 = vmul.f32 %v126, %v106
    %s131 = scalar_lea.vmem [#allocation5], 144
    %132 = vst [vmem:[%s131] sm:$0xff] %v130
    %v133 = vmul.f32 %v103, %v23
    %v134 = vmul.f32 %v106, %v25
    %v135 = vsub.f32 %v133, %v134
    %v136 = vmul.f32 %v106, %v23
    %v137 = vmul.f32 %v103, %v25
    %v138 = vadd.f32 %v136, %v137
    %v139 = vmul.f32 %v135, 0.5900436
    %s140 = scalar_lea.vmem [#allocation5], 120
    %141 = vst [vmem:[%s140] sm:$0xff] %v139
    %v142 = vmul.f32 %v138, 0.5900436
    %s143 = scalar_lea.vmem [#allocation5], 72
    %144 = vst [vmem:[%s143] sm:$0xff] %v142
    %v145 = vmul.f32 %v27, 105.0
    %v146 = vmul.f32 %v145, 0.016858388
    %v147 = vmul.f32 %v146, %v135
    %s148 = scalar_lea.vmem [#allocation5], 184
    %149 = vst [vmem:[%s148] sm:$0xff] %v147
    %v150 = vmul.f32 %v146, %v138
    %s151 = scalar_lea.vmem [#allocation5], 136
    %152 = vst [vmem:[%s151] sm:$0xff] %v150
    %v153 = vmul.f32 %v135, %v23
    %v154 = vmul.f32 %v138, %v25
    %v155 = vsub.f32 %v153, %v154
    %v156 = vmul.f32 %v138, %v23
    %v157 = vmul.f32 %v135, %v25
    %v158 = vadd.f32 %v156, %v157
    %v159 = vmul.f32 %v155, 0.6258357
    %s160 = scalar_lea.vmem [#allocation5], 192
    %161 = vst [vmem:[%s160] sm:$0xff] %v159
    %v162 = vmul.f32 %v158, 0.6258357
    %s163 = scalar_lea.vmem [#allocation5], 128
    %164 = vst [vmem:[%s163] sm:$0xff] %v162
    // Predicated region
    $region10: #{tpu_custom_call.1} parent=1 // pred_check
      _
    $region11: #{tpu_custom_call.1} parent=1 // pred_check_branch
      %166 = sbr.rel (0) target = $region13
    $region12: #{tpu_custom_call.1} parent=1 // pred_region
      %s168 = ssub.s32 3200, 3200
      %169 = vsyncadd [#allocation4], %s168
      %s170 = sshll.u32 [#allocation5], 4
      %s171 = int_to_ptr.vmem [resolvable:$true] %s170
      %176 = dma.vmem_to_hbm [thread:$0]  %s171, 3200, %s1, [#allocation4], 128, 128, 8
    $region13: #{tpu_custom_call.1} parent=1 // pred_fallthru
      _
    // Predicated region
    $region14: #{tpu_custom_call.1} parent=1 // pred_check
      _
    $region15: #{tpu_custom_call.1} parent=1 // pred_check_branch
      %178 = sbr.rel (0) target = $region17
    $region16: #{tpu_custom_call.1} parent=1 // pred_region
      %179 = dma.done [#allocation4], 3200
    $region17: #{tpu_custom_call.1} parent=1 // pred_fallthru
      _
    %180 = vsyncpa [#allocation3], 1
    %181 = vsyncpa [#allocation4], 1

</llo_original>
